<compile_context>
chip_gen: v6e
topology: v6e:2x2x1
jax: 0.10.0
libtpu: 0.0.40
codegen_flags: <defaults>
</compile_context>

<pallas_src>
import functools
import math

import jax
import jax.numpy as jnp
from jax.experimental import pallas as pl
from jax.experimental.pallas import tpu as pltpu


# -----------------------------------------------------------------------------
# Per-generation VMEM sizing (review: don't hard-code the v7x 32 MiB cap).
# -----------------------------------------------------------------------------
def _vmem_limit_bytes():
    cap = None
    try:
        cap = getattr(pltpu.get_tpu_info(), "vmem_capacity_bytes", None)
    except Exception:
        cap = None
    if not cap:
        cap = 64 * 1024 * 1024            # conservative fallback (v7x physical)
    # 3/4 of physical, capped at 96 MiB -> 48 MiB on v7x, 96 MiB on v5e/v6e.
    return int(min(cap * 3 // 4, 96 * 1024 * 1024))


def _pick_row_tile(m, row_bytes, budget_bytes, sublane):
    """Largest multiple-of-`sublane` divisor of m whose block fits the budget."""
    if m % sublane != 0:
        return m                          # full extent is always a legal block dim
    best = sublane
    t = sublane
    while t <= m:
        if m % t == 0 and t * row_bytes <= budget_bytes:
            best = t
        t += sublane
    return best


# -----------------------------------------------------------------------------
# Stem kernel 1: im2col GEMM for conv1 (no bias) + per-channel sum / sum-of-
# squares accumulation for the training-mode BatchNorm2d that follows.  The
# (1, Cout) stats outputs are revisited across the M axis ('arbitrary') and stay
# resident in VMEM as accumulators.
# -----------------------------------------------------------------------------
def _conv_gemm_stats_kernel(p_ref, w_ref, y_ref, s_ref, ss_ref):
    i = pl.program_id(0)

    @pl.when(i == 0)
    def _():
        s_ref[...] = jnp.zeros_like(s_ref)
        ss_ref[...] = jnp.zeros_like(ss_ref)

    y = jnp.dot(p_ref[...].astype(jnp.float32), w_ref[...].astype(jnp.float32),
                preferred_element_type=jnp.float32)
    y_ref[...] = y
    s_ref[...] += jnp.sum(y, axis=0, keepdims=True)
    ss_ref[...] += jnp.sum(y * y, axis=0, keepdims=True)


# -----------------------------------------------------------------------------
# Stem kernel 2: apply BatchNorm2d (batch statistics, biased variance, eps=1e-5,
# weight=1 / bias=0 init per the module) + ReLU, tiled over the im2col rows.
# -----------------------------------------------------------------------------
def _bn_relu_kernel(y_ref, s_ref, ss_ref, g_ref, b_ref, o_ref, *, inv_count, eps):
    mu = s_ref[...] * inv_count                         # (1, Cout)
    var = ss_ref[...] * inv_count - mu * mu             # biased variance
    scale = jax.lax.rsqrt(var + eps) * g_ref[...]
    shift = b_ref[...] - mu * scale
    o_ref[...] = jnp.maximum(y_ref[...] * scale + shift, 0.0).astype(o_ref.dtype)


# -----------------------------------------------------------------------------
# MaxPool2d(kernel=3, stride=2, padding=0, ceil_mode=True) on NHWC tiles.
# Out-of-range taps of ceil-mode windows are pre-padded with -inf, so every
# max is a plain elementwise maximum of static slices (no strided lane games).
# -----------------------------------------------------------------------------
def _win_max(x, axis, start, k):
    out = jax.lax.slice_in_dim(x, start, start + 1, axis=axis)
    for j in range(1, k):
        out = jnp.maximum(out, jax.lax.slice_in_dim(x, start + j, start + j + 1,
                                                    axis=axis))
    return out


def _maxpool_kernel(x_ref, o_ref, *, oh, ow, k, stride):
    x = x_ref[...]                                      # (1, Hp, Wp, C) channels-last
    for oy in range(oh):
        hmax = _win_max(x, axis=1, start=stride * oy, k=k)      # (1, 1, Wp, C)
        for ox in range(ow):
            o_ref[:, oy:oy + 1, ox:ox + 1, :] = _win_max(
                hmax, axis=2, start=stride * ox, k=k)           # (1, 1, 1, C)


# -----------------------------------------------------------------------------
# Head: AvgPool2d(7, stride=1) on the canonical 7x7 ResNet map == global average
# pool.  x block (tn, HW, tc) keeps C lane-dense; the sum over HW is a cheap
# sublane reduce.  Optional fused fc (include_top=True): the channel grid axis
# becomes the fc reduction, accumulated into the resident (tn, num_classes)
# output block.
# -----------------------------------------------------------------------------
def _gap_kernel(x_ref, o_ref, *, inv_hw):
    o_ref[...] = (jnp.sum(x_ref[...].astype(jnp.float32), axis=1)
                  * inv_hw).astype(o_ref.dtype)


def _gap_fc_kernel(x_ref, w_ref, b_ref, o_ref, *, inv_hw):
    c = pl.program_id(1)

    @pl.when(c == 0)
    def _():
        o_ref[...] = jnp.zeros_like(o_ref)

    g = jnp.sum(x_ref[...].astype(jnp.float32), axis=1) * inv_hw        # (tn, tc)
    o_ref[...] += jnp.dot(g, w_ref[...].astype(jnp.float32),
                          preferred_element_type=jnp.float32)

    @pl.when(c == pl.num_programs(1) - 1)
    def _():
        o_ref[...] += b_ref[...]


# -----------------------------------------------------------------------------
# Wrappers.
# -----------------------------------------------------------------------------
def _im2col(x_nchw, k, stride, pad):
    """7x7/stride-2 patches, rows ordered (n, oh, ow) and features (cin, ky, kx)
    to match conv_w.reshape(cout, cin*k*k)."""
    n, c, h, w = x_nchw.shape
    oh = (h + 2 * pad - k) // stride + 1
    ow = (w + 2 * pad - k) // stride + 1
    xp = jnp.pad(x_nchw, ((0, 0), (0, 0), (pad, pad), (pad, pad)))
    cols = []
    for ky in range(k):
        for kx in range(k):
            cols.append(jax.lax.slice(
                xp, (0, 0, ky, kx),
                (n, c, ky + stride * (oh - 1) + 1, kx + stride * (ow - 1) + 1),
                (1, 1, stride, stride)))                        # (n, c, oh, ow)
    pat = jnp.stack(cols, axis=2)                               # (n, c, k*k, oh, ow)
    pat = jnp.transpose(pat, (0, 3, 4, 1, 2))                   # (n, oh, ow, c, k*k)
    return pat.reshape(n * oh * ow, c * k * k), oh, ow


def conv1_bn_relu(x_nchw, conv_w, gamma, beta, *, eps=1e-5, m_tile=None):
    """conv1 (im2col GEMM) + BatchNorm2d (batch stats) + ReLU -> NHWC output."""
    n = x_nchw.shape[0]
    cout, cin, kh, kw = conv_w.shape
    patches, oh, ow = _im2col(x_nchw, kh, 2, 3)                 # (M, K), NHWC row order
    m, kdim = patches.shape
    w2d = conv_w.reshape(cout, cin * kh * kw).T                 # (K, Cout)

    vmem = _vmem_limit_bytes()
    itemsize = patches.dtype.itemsize
    sublane = 8 * max(1, 4 // itemsize)                         # dtype-aware (bf16 -> 16)
    row_bytes = kdim * itemsize + cout * 4
    # ~8 MiB/block on v7x, ~16 MiB on v5e/v6e (review items 2/5).
    tm = m_tile if m_tile is not None else _pick_row_tile(
        m, row_bytes, vmem // 6, sublane)
    assert m % tm == 0

    grid = (m // tm,)
    conv_cost = pl.CostEstimate(
        flops=int(2 * m * kdim * cout), transcendentals=0,
        bytes_accessed=int(m * kdim * itemsize + kdim * cout * 4 + m * cout * 4))

    conv_out, csum, csumsq = pl.pallas_call(
        _conv_gemm_stats_kernel,
        out_shape=(jax.ShapeDtypeStruct((m, cout), jnp.float32),
                   jax.ShapeDtypeStruct((1, cout), jnp.float32),
                   jax.ShapeDtypeStruct((1, cout), jnp.float32)),
        grid=grid,
        in_specs=[pl.BlockSpec((tm, kdim), lambda i: (i, 0)),
                  pl.BlockSpec((kdim, cout), lambda i: (0, 0))],
        out_specs=[pl.BlockSpec((tm, cout), lambda i: (i, 0)),
                   pl.BlockSpec((1, cout), lambda i: (0, 0)),
                   pl.BlockSpec((1, cout), lambda i: (0, 0))],
        compiler_params=pltpu.CompilerParams(
            dimension_semantics=("arbitrary",), vmem_limit_bytes=vmem),
        cost_estimate=conv_cost,
    )(patches, w2d)

    out = pl.pallas_call(
        functools.partial(_bn_relu_kernel, inv_count=1.0 / float(m), eps=eps),
        out_shape=jax.ShapeDtypeStruct((m, cout), jnp.float32),
        grid=grid,
        in_specs=[pl.BlockSpec((tm, cout), lambda i: (i, 0)),
                  pl.BlockSpec((1, cout), lambda i: (0, 0)),
                  pl.BlockSpec((1, cout), lambda i: (0, 0)),
                  pl.BlockSpec((1, cout), lambda i: (0, 0)),
                  pl.BlockSpec((1, cout), lambda i: (0, 0))],
        out_specs=pl.BlockSpec((tm, cout), lambda i: (i, 0)),
        compiler_params=pltpu.CompilerParams(
            dimension_semantics=("parallel",), vmem_limit_bytes=vmem),
    )(conv_out, csum, csumsq, gamma.reshape(1, -1), beta.reshape(1, -1))

    return out.reshape(n, oh, ow, cout)                         # channels-last (free)


def maxpool_3x3_s2_ceil(x_nhwc):
    n, h, w, c = x_nhwc.shape
    k, s = 3, 2
    oh = -(-(h - k) // s) + 1                                   # ceil_mode, padding=0
    ow = -(-(w - k) // s) + 1
    assert (oh - 1) * s <= h - 1 and (ow - 1) * s <= w - 1      # PyTorch ceil-mode rule
    hp, wp = (oh - 1) * s + k, (ow - 1) * s + k
    # ceil-mode windows ignore out-of-range taps: pad with -inf so they never win.
    xpad = jnp.pad(x_nhwc, ((0, 0), (0, hp - h), (0, wp - w), (0, 0)),
                   constant_values=-jnp.inf)
    return pl.pallas_call(
        functools.partial(_maxpool_kernel, oh=oh, ow=ow, k=k, stride=s),
        out_shape=jax.ShapeDtypeStruct((n, oh, ow, c), x_nhwc.dtype),
        grid=(n,),
        in_specs=[pl.BlockSpec((1, hp, wp, c), lambda i: (i, 0, 0, 0))],
        out_specs=pl.BlockSpec((1, oh, ow, c), lambda i: (i, 0, 0, 0)),
        compiler_params=pltpu.CompilerParams(
            dimension_semantics=("parallel",),
            vmem_limit_bytes=_vmem_limit_bytes()),
    )(xpad)


def _gap_tiles(n, c):
    tn = n if n % 8 != 0 else min(n, 8)
    tc = 128 if c % 128 == 0 else c      # >=2 'parallel' points for v7x when C>=256
    return tn, tc


def avgpool7_gap(x_nhwc):
    """nn.AvgPool2d(7, stride=1) on the canonical 7x7 ResNet map == GAP."""
    n, h, w, c = x_nhwc.shape
    assert h == 7 and w == 7, "AvgPool2d(7,1) ported as GAP for the 7x7 head"
    # TODO(synk): general sliding-window AvgPool2d(7, stride=1) for H, W > 7.
    hw = h * w
    x = x_nhwc.reshape(n, hw, c)                                # C stays lane-dense
    tn, tc = _gap_tiles(n, c)
    cost = pl.CostEstimate(flops=int(n * hw * c), transcendentals=0,
                           bytes_accessed=int(x.size * x.dtype.itemsize + n * c * 4))
    return pl.pallas_call(
        functools.partial(_gap_kernel, inv_hw=1.0 / float(hw)),
        out_shape=jax.ShapeDtypeStruct((n, c), jnp.float32),
        grid=(n // tn, c // tc),
        in_specs=[pl.BlockSpec((tn, hw, tc), lambda i, j: (i, 0, j))],
        out_specs=pl.BlockSpec((tn, tc), lambda i, j: (i, j)),
        compiler_params=pltpu.CompilerParams(
            dimension_semantics=("parallel", "parallel"),
            vmem_limit_bytes=_vmem_limit_bytes()),
        cost_estimate=cost,
    )(x)


def avgpool7_gap_fc(x_nhwc, fc_w_t, fc_b):
    """Fused GAP + Linear head (include_top=True path), one pallas_call."""
    n, h, w, c = x_nhwc.shape
    assert h == 7 and w == 7
    hw = h * w
    nc = fc_w_t.shape[1]
    x = x_nhwc.reshape(n, hw, c)
    tn, tc = _gap_tiles(n, c)
    cost = pl.CostEstimate(flops=int(n * hw * c + 2 * n * c * nc), transcendentals=0,
                           bytes_accessed=int(x.size * x.dtype.itemsize
                                              + c * nc * 4 + n * nc * 4))
    return pl.pallas_call(
        functools.partial(_gap_fc_kernel, inv_hw=1.0 / float(hw)),
        out_shape=jax.ShapeDtypeStruct((n, nc), jnp.float32),
        grid=(n // tn, c // tc),
        in_specs=[pl.BlockSpec((tn, hw, tc), lambda i, j: (i, 0, j)),
                  pl.BlockSpec((tc, nc), lambda i, j: (j, 0)),
                  pl.BlockSpec((1, nc), lambda i, j: (0, 0))],
        out_specs=pl.BlockSpec((tn, nc), lambda i, j: (i, 0)),
        compiler_params=pltpu.CompilerParams(
            dimension_semantics=("parallel", "arbitrary"),
            vmem_limit_bytes=_vmem_limit_bytes()),
        cost_estimate=cost,
    )(x, fc_w_t, fc_b.reshape(1, -1))


def resnet_forward(x_nchw, params, *, include_top=False, gemm_m_tile=None):
    """ResNet.forward from the spec (implementable parts), NHWC internally."""
    y = conv1_bn_relu(x_nchw, params["conv1_w"], params["bn1_gamma"],
                      params["bn1_beta"], m_tile=gemm_m_tile)
    y = maxpool_3x3_s2_ceil(y)
    # TODO(synk): layer1..layer4 use the externally supplied `block` module
    # (BasicBlock/Bottleneck is not defined in this file), so the residual stack
    # cannot be ported; the forward proceeds directly to the pooling head.
    if include_top:
        return avgpool7_gap_fc(y, params["fc_w_t"], params["fc_b"])
    g = avgpool7_gap(y)
    return g.reshape(g.shape[0], g.shape[1], 1, 1)              # (N, C, 1, 1)


# -----------------------------------------------------------------------------
# Pure-JAX reference for correctness checking.
# -----------------------------------------------------------------------------
def resnet_forward_ref(x_nchw, params, *, include_top=False, eps=1e-5):
    hi = jax.lax.Precision.HIGHEST
    y = jax.lax.conv_general_dilated(
        x_nchw, params["conv1_w"], window_strides=(2, 2),
        padding=((3, 3), (3, 3)),
        dimension_numbers=("NCHW", "OIHW", "NCHW"), precision=hi)
    mu = jnp.mean(y, axis=(0, 2, 3), keepdims=True)
    var = jnp.mean((y - mu) ** 2, axis=(0, 2, 3), keepdims=True)
    y = (y - mu) * jax.lax.rsqrt(var + eps)
    y = y * params["bn1_gamma"].reshape(1, -1, 1, 1) \
          + params["bn1_beta"].reshape(1, -1, 1, 1)
    y = jnp.maximum(y, 0.0)
    n, c, h, w = y.shape
    oh = -(-(h - 3) // 2) + 1
    ow = -(-(w - 3) // 2) + 1
    hp, wp = (oh - 1) * 2 + 3, (ow - 1) * 2 + 3
    yp = jnp.pad(y, ((0, 0), (0, 0), (0, hp - h), (0, wp - w)),
                 constant_values=-jnp.inf)
    y = jax.lax.reduce_window(yp, -jnp.inf, jax.lax.max,
                              (1, 1, 3, 3), (1, 1, 2, 2), "VALID")
    g = jnp.mean(y, axis=(2, 3))
    if include_top:
        return jnp.dot(g, params["fc_w_t"], precision=hi) + params["fc_b"]
    return g.reshape(n, c, 1, 1)


if __name__ == "__main__":
    key = jax.random.PRNGKey(0)
    k_x, k_w, k_fcw, k_fcb = jax.random.split(key, 4)

    # Small shapes consistent with the stem: 28x28 RGB -> conv1/2 -> 14x14
    # -> maxpool(ceil)/2 -> 7x7 -> AvgPool2d(7,1) == GAP.
    N, Cin, H, W = 2, 3, 28, 28
    Cout = 64
    num_classes = 16          # spec default is 1000; kept small for the demo

    x = jax.random.normal(k_x, (N, Cin, H, W), dtype=jnp.float32)

    # Parameter init per the module: conv ~ N(0, sqrt(2/n)) with n = kh*kw*cout,
    # BN weight=1 bias=0, Linear default uniform(+-1/sqrt(fan_in)).
    fan = 7 * 7 * Cout
    conv1_w = jax.random.normal(k_w, (Cout, Cin, 7, 7), jnp.float32) * math.sqrt(2.0 / fan)
    bn1_gamma = jnp.ones((Cout,), jnp.float32)
    bn1_beta = jnp.zeros((Cout,), jnp.float32)
    # NOTE: the spec builds fc with in_features = 512*block.expansion; since the
    # residual layers (external `block`) are not ported, fc here matches the
    # channel count actually reaching the head (64).
    bound = 1.0 / math.sqrt(Cout)
    fc_w_t = jax.random.uniform(k_fcw, (Cout, num_classes), jnp.float32, -bound, bound)
    fc_b = jax.random.uniform(k_fcb, (num_classes,), jnp.float32, -bound, bound)

    params = dict(conv1_w=conv1_w, bn1_gamma=bn1_gamma, bn1_beta=bn1_beta,
                  fc_w_t=fc_w_t, fc_b=fc_b)

    # gemm_m_tile=56 -> 7 accumulation steps over the M = 2*14*14 = 392 im2col
    # rows (exercises the BN-stats accumulator init / revisit path).
    feat = jax.block_until_ready(
        resnet_forward(x, params, include_top=False, gemm_m_tile=56))
    logits = jax.block_until_ready(
        resnet_forward(x, params, include_top=True, gemm_m_tile=56))

    feat_ref = resnet_forward_ref(x, params, include_top=False)
    logits_ref = resnet_forward_ref(x, params, include_top=True)

    assert feat.shape == (N, Cout, 1, 1)
    assert logits.shape == (N, num_classes)
    assert jnp.allclose(feat, feat_ref, atol=5e-4, rtol=5e-4), "feature mismatch"
    assert jnp.allclose(logits, logits_ref, atol=5e-4, rtol=5e-4), "logits mismatch"

    print("KERNEL_OK")
</pallas_src>

<mosaic_0001>
module attributes {stable_mosaic.version = 11 : i64} {
  func.func @_conv_gemm_stats_kernel(%arg0: i32, %arg1: memref<56x147xf32, #tpu.memory_space<vmem>>, %arg2: memref<147x64xf32, #tpu.memory_space<vmem>>, %arg3: memref<56x64xf32, #tpu.memory_space<vmem>>, %arg4: memref<1x64xf32, #tpu.memory_space<vmem>>, %arg5: memref<1x64xf32, #tpu.memory_space<vmem>>) attributes {dimension_semantics = [#tpu.dimension_semantics<arbitrary>], iteration_bounds = array<i64: 7>, scalar_prefetch = 0 : i64, scratch_operands = 0 : i64, tpu.core_type = #tpu.core_type<tc>, window_params = [{transform_indices = @transform_0, window_bounds = array<i64: 56, 147>}, {pipeline_mode = #tpu.pipeline_mode<synchronous>, transform_indices = @transform_1, window_bounds = array<i64: 147, 64>}, {transform_indices = @transform_2, window_bounds = array<i64: 56, 64>}, {pipeline_mode = #tpu.pipeline_mode<synchronous>, transform_indices = @transform_3, window_bounds = array<i64: 1, 64>}, {pipeline_mode = #tpu.pipeline_mode<synchronous>, transform_indices = @transform_4, window_bounds = array<i64: 1, 64>}]} {
    %c0_i32 = arith.constant 0 : i32
    %0 = arith.cmpi eq, %arg0, %c0_i32 : i32
    %1 = arith.extui %0 : i1 to i32
    %c0_i32_0 = arith.constant 0 : i32
    %2 = arith.cmpi ne, %1, %c0_i32_0 : i32
    scf.if %2 {
      %cst_16 = arith.constant 0.000000e+00 : f32
      %18 = vector.broadcast %cst_16 : f32 to vector<1x64xf32>
      %c0_17 = arith.constant 0 : index
      %c0_18 = arith.constant 0 : index
      %19 = vector.load %arg4[%c0_17, %c0_18] : memref<1x64xf32, #tpu.memory_space<vmem>>, vector<1x64xf32>
      tpu.vector_store %arg4[%c0_17, %c0_18], %18 {strides = array<i32>} : memref<1x64xf32, #tpu.memory_space<vmem>>, vector<1x64xf32>,
      %cst_19 = arith.constant 0.000000e+00 : f32
      %20 = vector.broadcast %cst_19 : f32 to vector<1x64xf32>
      %c0_20 = arith.constant 0 : index
      %c0_21 = arith.constant 0 : index
      %21 = vector.load %arg5[%c0_20, %c0_21] : memref<1x64xf32, #tpu.memory_space<vmem>>, vector<1x64xf32>
      tpu.vector_store %arg5[%c0_20, %c0_21], %20 {strides = array<i32>} : memref<1x64xf32, #tpu.memory_space<vmem>>, vector<1x64xf32>,
    } else {
    }
    %c0 = arith.constant 0 : index
    %c0_1 = arith.constant 0 : index
    %3 = vector.load %arg1[%c0, %c0_1] : memref<56x147xf32, #tpu.memory_space<vmem>>, vector<56x147xf32>
    %c0_2 = arith.constant 0 : index
    %c0_3 = arith.constant 0 : index
    %4 = vector.load %arg2[%c0_2, %c0_3] : memref<147x64xf32, #tpu.memory_space<vmem>>, vector<147x64xf32>
    %cst = arith.constant dense<0.000000e+00> : vector<56x64xf32>
    %5 = tpu.matmul %3, %4, %cst {dimension_numbers = #tpu.dot_dimension_numbers<[1], [0], [0], [1], [0, 0, 1, 1], [], []>} : vector<56x147xf32>, vector<147x64xf32>, vector<56x64xf32> -> vector<56x64xf32>
    %c0_4 = arith.constant 0 : index
    %c0_5 = arith.constant 0 : index
    %6 = vector.load %arg3[%c0_4, %c0_5] : memref<56x64xf32, #tpu.memory_space<vmem>>, vector<56x64xf32>
    tpu.vector_store %arg3[%c0_4, %c0_5], %5 {strides = array<i32>} : memref<56x64xf32, #tpu.memory_space<vmem>>, vector<56x64xf32>,
    %c0_6 = arith.constant 0 : index
    %c0_7 = arith.constant 0 : index
    %7 = vector.load %arg4[%c0_6, %c0_7] : memref<1x64xf32, #tpu.memory_space<vmem>>, vector<1x64xf32>
    %cst_8 = arith.constant dense<0.000000e+00> : vector<64xf32>
    %8 = vector.multi_reduction <add>, %5, %cst_8 [0] : vector<56x64xf32> to vector<64xf32>
    %9 = vector.shape_cast %8 : vector<64xf32> to vector<1x64xf32>
    %10 = arith.addf %7, %9 : vector<1x64xf32>
    %c0_9 = arith.constant 0 : index
    %c0_10 = arith.constant 0 : index
    %11 = vector.load %arg4[%c0_9, %c0_10] : memref<1x64xf32, #tpu.memory_space<vmem>>, vector<1x64xf32>
    tpu.vector_store %arg4[%c0_9, %c0_10], %10 {strides = array<i32>} : memref<1x64xf32, #tpu.memory_space<vmem>>, vector<1x64xf32>,
    %c0_11 = arith.constant 0 : index
    %c0_12 = arith.constant 0 : index
    %12 = vector.load %arg5[%c0_11, %c0_12] : memref<1x64xf32, #tpu.memory_space<vmem>>, vector<1x64xf32>
    %13 = arith.mulf %5, %5 : vector<56x64xf32>
    %cst_13 = arith.constant dense<0.000000e+00> : vector<64xf32>
    %14 = vector.multi_reduction <add>, %13, %cst_13 [0] : vector<56x64xf32> to vector<64xf32>
    %15 = vector.shape_cast %14 : vector<64xf32> to vector<1x64xf32>
    %16 = arith.addf %12, %15 : vector<1x64xf32>
    %c0_14 = arith.constant 0 : index
    %c0_15 = arith.constant 0 : index
    %17 = vector.load %arg5[%c0_14, %c0_15] : memref<1x64xf32, #tpu.memory_space<vmem>>, vector<1x64xf32>
    tpu.vector_store %arg5[%c0_14, %c0_15], %16 {strides = array<i32>} : memref<1x64xf32, #tpu.memory_space<vmem>>, vector<1x64xf32>,
    return
  }
  func.func @transform_0(%arg0: i32) -> (i32, i32) {
    %c0_i32 = arith.constant 0 : i32
    %c0_i32_0 = arith.constant 0 : i32
    return %arg0, %c0_i32 : i32, i32
  }
  func.func @transform_1(%arg0: i32) -> (i32, i32) {
    %c0_i32 = arith.constant 0 : i32
    %c0_i32_0 = arith.constant 0 : i32
    %c0_i32_1 = arith.constant 0 : i32
    return %c0_i32, %c0_i32_0 : i32, i32
  }
  func.func @transform_2(%arg0: i32) -> (i32, i32) {
    %c0_i32 = arith.constant 0 : i32
    %c0_i32_0 = arith.constant 0 : i32
    return %arg0, %c0_i32 : i32, i32
  }
  func.func @transform_3(%arg0: i32) -> (i32, i32) {
    %c0_i32 = arith.constant 0 : i32
    %c0_i32_0 = arith.constant 0 : i32
    %c0_i32_1 = arith.constant 0 : i32
    return %c0_i32, %c0_i32_0 : i32, i32
  }
  func.func @transform_4(%arg0: i32) -> (i32, i32) {
    %c0_i32 = arith.constant 0 : i32
    %c0_i32_0 = arith.constant 0 : i32
    %c0_i32_1 = arith.constant 0 : i32
    return %c0_i32, %c0_i32_0 : i32, i32
  }
}

</mosaic_0001>

<llo_original>
// kernel: tpu_custom_call.1
$region0: #{tpu_custom_call.1}
  #allocation0 [shape = 'u32[]', space=smem, size = 0x4, offset = 0x4, fixed_abs, tag = 'smem constant byte address 0x4 - core index']
  #allocation1 [shape = 'u32[144,128]{1,0:T(1,128)}', space=vmem, size = 0x12000, scoped, tag = 'internal scratch']
  %s0 = inlined_call_operand.vmem [shape: f32[392,147], index: 0, kind: input, shape index: {}]
  %s1 = inlined_call_operand.vmem [shape: f32[147,64], index: 1, kind: input, shape index: {}]
  %s2 = inlined_call_operand.vmem [shape: f32[392,64], index: 2, kind: output, shape index: {0}]
  %s3 = inlined_call_operand.hbm [shape: f32[1,64], index: 3, kind: output, shape index: {1}]
  %s4 = inlined_call_operand.hbm [shape: f32[1,64], index: 4, kind: output, shape index: {2}]
  %5 = xla_tuple %s2, %s3, %s4
  %s6 = sld [smem:[#allocation0]]
  $region61: #{tpu_custom_call.1} parent=0
    _
  %s8 = ssub.s32 1, %s6
  %s9 = scalar_select 0, %s8, %s6
  $region1: #{tpu_custom_call.1} parent=0
    #allocation2 [shape = 'u8[512]{0}', space=vmem, size = 0x400, scoped, tag = 'output window, operand 1, single buffered']
    #allocation3 [shape = 's32[2]{0}', space=sflag, size = 0x8, scoped, tag = 'scoped memory for tpu_custom_call.1']
    #allocation4 [shape = 'u8[512]{0}', space=vmem, size = 0x400, scoped, tag = 'output window, operand 2, single buffered']
    #allocation5 [shape = 's32[1]{0}', space=sflag, size = 0x4, scoped, tag = 'scoped memory for tpu_custom_call.1']
    %10 = vsyncpa [#allocation3], 0
    %11 = vsyncpa [#allocation5], 0
    loop: start=0, step=1, limit=9
    $region2: #{tpu_custom_call.1} parent=1 // loop_pre_header
      _
    $region3: #{tpu_custom_call.1} parent=1 // loop_header
      %s13 = sphi 0, %s17
      %p14 = scmp.ge.s32.totalorder %s13, 9
      %s23 = sphi 0, %s25
      %s26 = sphi 0, %s23
      %s27 = sphi 0, %s26
      %s43 = sphi 0, %s27
      %s47 = sphi 0, %s47
      %s49 = sphi 0, %s47
      %s50 = sphi 0, %s49
      %s64 = sphi 0, %s50
      %s70 = sphi 0, %s72
      %s73 = sphi 0, %s70
      %s74 = sphi 0, %s73
      %s90 = sphi 0, %s74
      %s94 = sphi 0, %s94
      %s96 = sphi 0, %s94
      %s97 = sphi 0, %s96
      %s111 = sphi 0, %s97
      %s115 = sphi 0, %s115
      %s117 = sphi 0, %s115
      %s118 = sphi 0, %s117
      %s132 = sphi 0, %s118
    $region4: #{tpu_custom_call.1} parent=1 // loop_header_branch
      %16 = sbr.rel (%p14) target = $region8
    $region5: #{tpu_custom_call.1} parent=1 // loop_body
      %s18 = ssub.s32 %s13, 1
      %s19 = ssub.s32 %s13, 2
      %s20 = sadd.s32 %s13, 1
      %s21 = ssub.s32 %s13, %s20
      %p22 = scmp.eq.s32.totalorder %s21, 0
      %s24 = sadd.s32 %s23, 1
      %s25 = scalar_select %p22, %s23, %s24
      %p28 = pneg %p22
      %p29 = scmp.eq.s32.totalorder %s13, 6
      %p30 = por %p28, %p29
      %p31 = scmp.ne.s32.totalorder %s23, %s26
      %p32 = scmp.eq.s32.totalorder %s13, 0
      %p33 = por %p31, %p32
      %p34 = scmp.ne.s32.totalorder %s23, %s26
      %p35 = scmp.eq.s32.totalorder %s18, 6
      %p36 = por %p34, %p35
      %p37 = scmp.ne.s32.totalorder %s26, %s27
      %p38 = scmp.eq.s32.totalorder %s18, 0
      %p39 = por %p37, %p38
      %p40 = scmp.ne.s32.totalorder %s26, %s27
      %p41 = scmp.eq.s32.totalorder %s19, 6
      %p42 = por %p40, %p41
      %p44 = scmp.ne.s32.totalorder %s27, %s43
      %p45 = scmp.eq.s32.totalorder %s19, 0
      %p46 = por %p44, %p45
      %s48 = sadd.s32 %s47, 1
      %p51 = scmp.eq.s32.totalorder %s13, 6
      %p52 = scmp.ne.s32.totalorder %s47, %s49
      %p53 = scmp.eq.s32.totalorder %s13, 0
      %p54 = por %p52, %p53
      %p55 = scmp.ne.s32.totalorder %s47, %s49
      %p56 = scmp.eq.s32.totalorder %s18, 6
      %p57 = por %p55, %p56
      %p58 = scmp.ne.s32.totalorder %s49, %s50
      %p59 = scmp.eq.s32.totalorder %s18, 0
      %p60 = por %p58, %p59
      %p61 = scmp.ne.s32.totalorder %s49, %s50
      %p62 = scmp.eq.s32.totalorder %s19, 6
      %p63 = por %p61, %p62
      %p65 = scmp.ne.s32.totalorder %s50, %s64
      %p66 = scmp.eq.s32.totalorder %s19, 0
      %p67 = por %p65, %p66
      %s68 = ssub.s32 %s13, %s20
      %p69 = scmp.eq.s32.totalorder %s68, 0
      %s71 = sadd.s32 %s70, 1
      %s72 = scalar_select %p69, %s70, %s71
      %p75 = pneg %p69
      %p76 = scmp.eq.s32.totalorder %s13, 6
      %p77 = por %p75, %p76
      %p78 = scmp.ne.s32.totalorder %s70, %s73
      %p79 = scmp.eq.s32.totalorder %s13, 0
      %p80 = por %p78, %p79
      %p81 = scmp.ne.s32.totalorder %s70, %s73
      %p82 = scmp.eq.s32.totalorder %s18, 6
      %p83 = por %p81, %p82
      %p84 = scmp.ne.s32.totalorder %s73, %s74
      %p85 = scmp.eq.s32.totalorder %s18, 0
      %p86 = por %p84, %p85
      %p87 = scmp.ne.s32.totalorder %s73, %s74
      %p88 = scmp.eq.s32.totalorder %s19, 6
      %p89 = por %p87, %p88
      %p91 = scmp.ne.s32.totalorder %s74, %s90
      %p92 = scmp.eq.s32.totalorder %s19, 0
      %p93 = por %p91, %p92
      %s95 = sadd.s32 %s94, 1
      %p98 = scmp.eq.s32.totalorder %s13, 6
      %p99 = scmp.ne.s32.totalorder %s94, %s96
      %p100 = scmp.eq.s32.totalorder %s13, 0
      %p101 = por %p99, %p100
      %p102 = scmp.ne.s32.totalorder %s94, %s96
      %p103 = scmp.eq.s32.totalorder %s18, 6
      %p104 = por %p102, %p103
      %p105 = scmp.ne.s32.totalorder %s96, %s97
      %p106 = scmp.eq.s32.totalorder %s18, 0
      %p107 = por %p105, %p106
      %p108 = scmp.ne.s32.totalorder %s96, %s97
      %p109 = scmp.eq.s32.totalorder %s19, 6
      %p110 = por %p108, %p109
      %p112 = scmp.ne.s32.totalorder %s97, %s111
      %p113 = scmp.eq.s32.totalorder %s19, 0
      %p114 = por %p112, %p113
      %s116 = sadd.s32 %s115, 1
      %p119 = scmp.eq.s32.totalorder %s13, 6
      %p120 = scmp.ne.s32.totalorder %s115, %s117
      %p121 = scmp.eq.s32.totalorder %s13, 0
      %p122 = por %p120, %p121
      %p123 = scmp.ne.s32.totalorder %s115, %s117
      %p124 = scmp.eq.s32.totalorder %s18, 6
      %p125 = por %p123, %p124
      %p126 = scmp.ne.s32.totalorder %s117, %s118
      %p127 = scmp.eq.s32.totalorder %s18, 0
      %p128 = por %p126, %p127
      %p129 = scmp.ne.s32.totalorder %s117, %s118
      %p130 = scmp.eq.s32.totalorder %s19, 6
      %p131 = por %p129, %p130
      %p133 = scmp.ne.s32.totalorder %s118, %s132
      %p134 = scmp.eq.s32.totalorder %s19, 0
      %p135 = por %p133, %p134
      %p136 = scmp.le.s32.totalorder 1, %s13
      %p137 = scmp.lt.s32.totalorder %s13, 8
      %p138 = pnand %p136, %p137
      %p139 = pneg %p138
      // Predicated region
      $region9: #{tpu_custom_call.1} parent=5 // pred_check
        _
      $region10: #{tpu_custom_call.1} parent=5 // pred_check_branch
        %141 = sbr.rel (%p138) target = $region12
      $region11: #{tpu_custom_call.1} parent=5 // pred_region
        %s142 = ssub.s32 %s13, 1
        // Predicated region
        $region13: #{tpu_custom_call.1} parent=11 // pred_check
          %p143 = pneg %p60
        $region14: #{tpu_custom_call.1} parent=11 // pred_check_branch
          %145 = sbr.rel (%p143) target = $region16
        $region15: #{tpu_custom_call.1} parent=11 // pred_region
          _
        $region16: #{tpu_custom_call.1} parent=11 // pred_fallthru
          _
      $region12: #{tpu_custom_call.1} parent=5 // pred_fallthru
        _
      %p146 = scmp.lt.s32.totalorder %s13, 7
      // Predicated region
      $region17: #{tpu_custom_call.1} parent=5 // pred_check
        %p147 = pneg %p146
      $region18: #{tpu_custom_call.1} parent=5 // pred_check_branch
        %149 = sbr.rel (%p147) target = $region20
      $region19: #{tpu_custom_call.1} parent=5 // pred_region
        // Predicated region
        $region21: #{tpu_custom_call.1} parent=19 // pred_check
          %p150 = pneg %p33
        $region22: #{tpu_custom_call.1} parent=19 // pred_check_branch
          %152 = sbr.rel (%p150) target = $region24
        $region23: #{tpu_custom_call.1} parent=19 // pred_region
          %s153 = smul.u32 7, %s13
          %p154 = scmp.lt.s32.totalorder %s153, 48
          %s155 = scalar_select %p154, %s153, 48
          %s156 = smul.addr %s155, 2
          %s157 = smul.addr %s156, 8
          %s158 = scalar_lea.vmem %s0, %s157
          %s159 = smul.u32 7, %s13
        $region24: #{tpu_custom_call.1} parent=19 // pred_fallthru
          _
      $region20: #{tpu_custom_call.1} parent=5 // pred_fallthru
        _
      %p160 = scmp.le.s32.totalorder 1, %s13
      %p161 = scmp.lt.s32.totalorder %s13, 8
      %p162 = pnand %p160, %p161
      %p163 = pneg %p162
      // Predicated region
      $region25: #{tpu_custom_call.1} parent=5 // pred_check
        _
      $region26: #{tpu_custom_call.1} parent=5 // pred_check_branch
        %165 = sbr.rel (%p162) target = $region28
      $region27: #{tpu_custom_call.1} parent=5 // pred_region
        %s166 = ssub.s32 %s13, 1
        %s167 = smul.u32 7, %s18
        %p168 = scmp.lt.s32.totalorder %s167, 48
        %s169 = scalar_select %p168, %s167, 48
        %s170 = smul.addr %s169, 2
        %s171 = smul.addr %s170, 8
        %s172 = scalar_lea.vmem %s0, %s171
        %p173 = pneg %p39
        %p174 = pneg %p36
        %p175 = pneg %p60
        %p176 = pneg %p57
        %p177 = pneg %p86
        %p178 = pneg %p83
        %s179 = smul.u32 7, %s18
        %p180 = scmp.lt.s32.totalorder %s179, 48
        %s181 = scalar_select %p180, %s179, 48
        %s182 = smul.addr %s181, 8
        %s183 = scalar_lea.vmem %s2, %s182
        %p184 = pneg %p107
        %p185 = pneg %p104
        %p186 = pneg %p128
        %p187 = pneg %p125
        %s188 = smul.u32 7, %s18
        %p189 = scmp.lt.s32.totalorder %s188, 48
        %s190 = scalar_select %p189, %s188, 48
        %s191 = smul.addr %s190, 2
        %s192 = smul.addr %s191, 8
        %s193 = scalar_lea.vmem %s0, %s192
        %s194 = smul.u32 7, %s18
        %s195 = smul.u32 7, %s18
        %p196 = scmp.lt.s32.totalorder %s195, 48
        %s197 = scalar_select %p196, %s195, 48
        %s198 = smul.addr %s197, 8
        %s199 = scalar_lea.vmem %s2, %s198
        %s200 = smul.u32 7, %s18
        %p201 = scmp.eq.s32.totalorder %s18, 0
        // Predicated region
        $region29: #{tpu_custom_call.1} parent=27 // pred_check
          %p202 = pneg %p201
        $region30: #{tpu_custom_call.1} parent=27 // pred_check_branch
          %204 = sbr.rel (%p202) target = $region32
        $region31: #{tpu_custom_call.1} parent=27 // pred_region
          %vm205 = vcmask 516096
          %206 = vst.msk [vmem:[#allocation2] sm:$0x1] %vm205, 0.0
          %207 = vst.msk [vmem:[#allocation4] sm:$0x1] %vm205, 0.0
        $region32: #{tpu_custom_call.1} parent=27 // pred_fallthru
          _
        %v208 = vld [vmem:[%s193] sm:$0xff]
        %v209 = vld [vmem:[%s193 + $0x8] sm:$0xff]
        %v210 = vld [vmem:[%s193 + $0x10] sm:$0xff]
        %v211 = vld [vmem:[%s193 + $0x18] sm:$0xff]
        %v212 = vld [vmem:[%s193 + $0x20] sm:$0xff]
        %v213 = vld [vmem:[%s193 + $0x28] sm:$0xff]
        %v214 = vld [vmem:[%s193 + $0x30] sm:$0xff]
        %v215 = vld [vmem:[%s193 + $0x38] sm:$0xff]
        %v216 = vld [vmem:[%s193 + $0x40] sm:$0xff]
        %v217 = vld [vmem:[%s193 + $0x48] sm:$0xff]
        %v218 = vld [vmem:[%s193 + $0x50] sm:$0xff]
        %v219 = vld [vmem:[%s193 + $0x58] sm:$0xff]
        %v220 = vld [vmem:[%s193 + $0x60] sm:$0xff]
        %v221 = vld [vmem:[%s193 + $0x68] sm:$0xff]
        %v222 = vld [vmem:[%s1] sm:$0xff]
        %v223 = vld [vmem:[%s1 + $0x8] sm:$0xff]
        %v224 = vld [vmem:[%s1 + $0x10] sm:$0xff]
        %v225 = vld [vmem:[%s1 + $0x18] sm:$0xff]
        %v226 = vld [vmem:[%s1 + $0x20] sm:$0xff]
        %v227 = vld [vmem:[%s1 + $0x28] sm:$0xff]
        %v228 = vld [vmem:[%s1 + $0x30] sm:$0xff]
        %v229 = vld [vmem:[%s1 + $0x38] sm:$0xff]
        %v230 = vld [vmem:[%s1 + $0x40] sm:$0xff]
        %v231 = vld [vmem:[%s1 + $0x48] sm:$0xff]
        %v232 = vld [vmem:[%s1 + $0x50] sm:$0xff]
        %v233 = vld [vmem:[%s1 + $0x58] sm:$0xff]
        %v234 = vld [vmem:[%s1 + $0x60] sm:$0xff]
        %v235 = vld [vmem:[%s1 + $0x68] sm:$0xff]
        %v236 = vld [vmem:[%s1 + $0x70] sm:$0xff]
        %v237 = vld [vmem:[%s1 + $0x78] sm:$0xff]
        %v238 = vld [vmem:[%s1 + $0x80] sm:$0xff]
        %v239 = vld [vmem:[%s1 + $0x88] sm:$0xff]
        %v240 = vld [vmem:[%s1 + $0x90] sm:$0x7]
        %vm241 = vcmask 154624
        %v243 = vsel %vm241, %v209, 0
        %v246 = vsel %vm241, %v211, 0
        %v249 = vsel %vm241, %v213, 0
        %v252 = vsel %vm241, %v215, 0
        %v255 = vsel %vm241, %v217, 0
        %v258 = vsel %vm241, %v219, 0
        %v261 = vsel %vm241, %v221, 0
        %vm263 = vcmask 1042432
        %v265 = vsel %vm263, %v240, 0
        %267 = vmatprep.subr.mxu0 0.0
        %268 = vmatpush1.msra.mxu0 %v237
        %269 = vmatprep.subr.mxu0 0.0
        %270 = vmatpush1.msra.mxu0 %v236
        %271 = vmatprep.subr.mxu0 0.0
        %272 = vmatpush1.msra.mxu0 %v235
        %273 = vmatprep.subr.mxu0 0.0
        %274 = vmatpush1.msra.mxu0 %v234
        %275 = vmatprep.subr.mxu0 0.0
        %276 = vmatpush1.msra.mxu0 %v233
        %277 = vmatprep.subr.mxu0 0.0
        %278 = vmatpush1.msra.mxu0 %v232
        %279 = vmatprep.subr.mxu0 0.0
        %280 = vmatpush1.msra.mxu0 %v231
        %281 = vmatprep.subr.mxu0 0.0
        %282 = vmatpush1.msra.mxu0 %v230
        %283 = vmatprep.subr.mxu0 0.0
        %284 = vmatpush1.msra.mxu0 %v229
        %285 = vmatprep.subr.mxu0 0.0
        %286 = vmatpush1.msra.mxu0 %v228
        %287 = vmatprep.subr.mxu0 0.0
        %288 = vmatpush1.msra.mxu0 %v227
        %289 = vmatprep.subr.mxu0 0.0
        %290 = vmatpush1.msra.mxu0 %v226
        %291 = vmatprep.subr.mxu0 0.0
        %292 = vmatpush1.msra.mxu0 %v225
        %293 = vmatprep.subr.mxu0 0.0
        %294 = vmatpush1.msra.mxu0 %v224
        %295 = vmatprep.subr.mxu0 0.0
        %296 = vmatpush1.msra.mxu0 %v223
        %297 = vmatprep.subr.mxu0 0.0
        %298 = vmatpush1.msra.mxu0 %v222
        %299 = vmatprep.subr.mxu0 0.0
        %300 = vmatpush2.msra.mxu0 0.0
        %301 = vmatprep.subr.mxu0 0.0
        %302 = vmatpush2.msra.mxu0 0.0
        %303 = vmatprep.subr.mxu0 0.0
        %304 = vmatpush2.msra.mxu0 0.0
        %305 = vmatprep.subr.mxu0 0.0
        %306 = vmatpush2.msra.mxu0 0.0
        %307 = vmatprep.subr.mxu0 0.0
        %308 = vmatpush2.msra.mxu0 0.0
        %309 = vmatprep.subr.mxu0 0.0
        %310 = vmatpush2.msra.mxu0 0.0
        %311 = vmatprep.subr.mxu0 0.0
        %312 = vmatpush2.msra.mxu0 0.0
        %313 = vmatprep.subr.mxu0 0.0
        %314 = vmatpush2.msra.mxu0 0.0
        %315 = vmatprep.subr.mxu0 0.0
        %316 = vmatpush2.msra.mxu0 0.0
        %317 = vmatprep.subr.mxu0 0.0
        %318 = vmatpush2.msra.mxu0 0.0
        %319 = vmatprep.subr.mxu0 0.0
        %320 = vmatpush2.msra.mxu0 0.0
        %321 = vmatprep.subr.mxu0 0.0
        %322 = vmatpush2.msra.mxu0 0.0
        %323 = vmatprep.subr.mxu0 0.0
        %324 = vmatpush2.msra.mxu0 0.0
        %325 = vmatprep.subr.mxu0 0.0
        %326 = vmatpush2.msra.mxu0 %v265
        %327 = vmatprep.subr.mxu0 0.0
        %328 = vmatpush2.msra.mxu0 %v239
        %329 = vmatprep.subr.mxu0 0.0
        %330 = vmatpush2.msra.mxu0 %v238
        %331 = vmatprep.mubr.f32.mxu0 %v243
        %332 = vmatmul.mubr.f32.gmra.mxu0 %v208
        %v333 = vpop.f32.mrf.mxu0
        %v334 = vadd.f32 0.0, %v333
        %v335 = vpop.f32.mrf.mxu0
        %336 = vmatprep.mubr.f32.mxu0 %v246
        %337 = vmatmul.mubr.f32.gmra.mxu0 %v210
        %v338 = vpop.f32.mrf.mxu0
        %v339 = vadd.f32 0.0, %v338
        %v340 = vpop.f32.mrf.mxu0
        %341 = vmatprep.mubr.f32.mxu0 %v249
        %342 = vmatmul.mubr.f32.gmra.mxu0 %v212
        %v343 = vpop.f32.mrf.mxu0
        %v344 = vadd.f32 0.0, %v343
        %v345 = vpop.f32.mrf.mxu0
        %346 = vmatprep.mubr.f32.mxu0 %v252
        %347 = vmatmul.mubr.f32.gmra.mxu0 %v214
        %v348 = vpop.f32.mrf.mxu0
        %v349 = vadd.f32 0.0, %v348
        %v350 = vpop.f32.mrf.mxu0
        %351 = vmatprep.mubr.f32.mxu0 %v255
        %352 = vmatmul.mubr.f32.gmra.mxu0 %v216
        %v353 = vpop.f32.mrf.mxu0
        %v354 = vadd.f32 0.0, %v353
        %v355 = vpop.f32.mrf.mxu0
        %356 = vmatprep.mubr.f32.mxu0 %v258
        %357 = vmatmul.mubr.f32.gmra.mxu0 %v218
        %v358 = vpop.f32.mrf.mxu0
        %v359 = vadd.f32 0.0, %v358
        %v360 = vpop.f32.mrf.mxu0
        %361 = vmatprep.mubr.f32.mxu0 %v261
        %362 = vmatmul.mubr.f32.gmra.mxu0 %v220
        %v363 = vpop.f32.mrf.mxu0
        %v364 = vadd.f32 0.0, %v363
        %v365 = vpop.f32.mrf.mxu0
        %366 = vdwg.mxu0
        %vm367 = vcmask 523264
        %368 = vst.msk [vmem:[%s199] sm:$0xff] %vm367, %v334
        %369 = vst.msk [vmem:[%s199 + $0x8] sm:$0xff] %vm367, %v339
        %370 = vst.msk [vmem:[%s199 + $0x10] sm:$0xff] %vm367, %v344
        %371 = vst.msk [vmem:[%s199 + $0x18] sm:$0xff] %vm367, %v349
        %372 = vst.msk [vmem:[%s199 + $0x20] sm:$0xff] %vm367, %v354
        %373 = vst.msk [vmem:[%s199 + $0x28] sm:$0xff] %vm367, %v359
        %374 = vst.msk [vmem:[%s199 + $0x30] sm:$0xff] %vm367, %v364
        %v375 = vld [vmem:[#allocation2] sm:$0x1]
        %v376 = vsel %vm367, %v334, 0.0
        %v377 = vsel %vm367, %v339, 0.0
        %v378 = vadd.f32 %v376, %v377
        %v379 = vsel %vm367, %v344, 0.0
        %v380 = vadd.f32 %v378, %v379
        %v381 = vsel %vm367, %v349, 0.0
        %v382 = vadd.f32 %v380, %v381
        %v383 = vsel %vm367, %v354, 0.0
        %v384 = vadd.f32 %v382, %v383
        %v385 = vsel %vm367, %v359, 0.0
        %v386 = vadd.f32 %v384, %v385
        %v387 = vsel %vm367, %v364, 0.0
        %v388 = vadd.f32 %v386, %v387
        %v389 = vrot.slane %v388, 4
        %v390 = vadd.f32 %v388, %v389
        %v391 = vrot.slane %v390, 2
        %v392 = vadd.f32 %v390, %v391
        %v393 = vrot.slane %v392, 1
        %v394 = vadd.f32 %v392, %v393
        %v395 = vadd.f32 %v375, %v394
        %vm396 = vcmask 516096
        %397 = vst.msk [vmem:[#allocation2] sm:$0x1] %vm396, %v395
        %v398 = vld [vmem:[#allocation4] sm:$0x1]
        %v399 = vmul.f32 %v334, %v334
        %v400 = vmul.f32 %v339, %v339
        %v401 = vmul.f32 %v344, %v344
        %v402 = vmul.f32 %v349, %v349
        %v403 = vmul.f32 %v354, %v354
        %v404 = vmul.f32 %v359, %v359
        %v405 = vmul.f32 %v364, %v364
        %v406 = vsel %vm367, %v399, 0.0
        %v407 = vsel %vm367, %v400, 0.0
        %v408 = vadd.f32 %v406, %v407
        %v409 = vsel %vm367, %v401, 0.0
        %v410 = vadd.f32 %v408, %v409
        %v411 = vsel %vm367, %v402, 0.0
        %v412 = vadd.f32 %v410, %v411
        %v413 = vsel %vm367, %v403, 0.0
        %v414 = vadd.f32 %v412, %v413
        %v415 = vsel %vm367, %v404, 0.0
        %v416 = vadd.f32 %v414, %v415
        %v417 = vsel %vm367, %v405, 0.0
        %v418 = vadd.f32 %v416, %v417
        %v419 = vrot.slane %v418, 4
        %v420 = vadd.f32 %v418, %v419
        %v421 = vrot.slane %v420, 2
        %v422 = vadd.f32 %v420, %v421
        %v423 = vrot.slane %v422, 1
        %v424 = vadd.f32 %v422, %v423
        %v425 = vadd.f32 %v398, %v424
        %426 = vst.msk [vmem:[#allocation4] sm:$0x1] %vm396, %v425
        %s427 = smul.u32 7, %s18
        %p428 = scmp.lt.s32.totalorder %s427, 48
        %s429 = scalar_select %p428, %s427, 48
        %s430 = smul.addr %s429, 8
        %s431 = scalar_lea.vmem %s2, %s430
        // Predicated region
        $region33: #{tpu_custom_call.1} parent=27 // pred_check
          %p432 = pneg %p83
        $region34: #{tpu_custom_call.1} parent=27 // pred_check_branch
          %434 = sbr.rel (%p432) target = $region36
        $region35: #{tpu_custom_call.1} parent=27 // pred_region
          %s435 = smul.u32 7, %s18
        $region36: #{tpu_custom_call.1} parent=27 // pred_fallthru
          _
        // Predicated region
        $region37: #{tpu_custom_call.1} parent=27 // pred_check
          %p436 = pneg %p104
        $region38: #{tpu_custom_call.1} parent=27 // pred_check_branch
          %438 = sbr.rel (%p436) target = $region40
        $region39: #{tpu_custom_call.1} parent=27 // pred_region
          %s440 = ssub.s32 16, 16
          %441 = vsyncadd [#allocation3], %s440
          %s443 = sshll.u32 [#allocation2], 4
          %s444 = int_to_ptr.vmem [resolvable:$true] %s443
          %446 = dma.vmem_to_hbm [thread:$0]  %s444, 16, %s3, [#allocation3]
        $region40: #{tpu_custom_call.1} parent=27 // pred_fallthru
          _
        // Predicated region
        $region41: #{tpu_custom_call.1} parent=27 // pred_check
          %p447 = pneg %p125
        $region42: #{tpu_custom_call.1} parent=27 // pred_check_branch
          %449 = sbr.rel (%p447) target = $region44
        $region43: #{tpu_custom_call.1} parent=27 // pred_region
          %s451 = ssub.s32 16, 16
          %452 = vsyncadd [#allocation5], %s451
          %s454 = sshll.u32 [#allocation4], 4
          %s455 = int_to_ptr.vmem [resolvable:$true] %s454
          %457 = dma.vmem_to_hbm [thread:$0]  %s455, 16, %s4, [#allocation5]
        $region44: #{tpu_custom_call.1} parent=27 // pred_fallthru
          _
        // Predicated region
        $region45: #{tpu_custom_call.1} parent=27 // pred_check
          %p458 = pneg %p104
        $region46: #{tpu_custom_call.1} parent=27 // pred_check_branch
          %460 = sbr.rel (%p458) target = $region48
        $region47: #{tpu_custom_call.1} parent=27 // pred_region
          %461 = dma.done [#allocation3], 16
        $region48: #{tpu_custom_call.1} parent=27 // pred_fallthru
          _
        // Predicated region
        $region49: #{tpu_custom_call.1} parent=27 // pred_check
          %p462 = pneg %p125
        $region50: #{tpu_custom_call.1} parent=27 // pred_check_branch
          %464 = sbr.rel (%p462) target = $region52
        $region51: #{tpu_custom_call.1} parent=27 // pred_region
          %465 = dma.done [#allocation5], 16
        $region52: #{tpu_custom_call.1} parent=27 // pred_fallthru
          _
      $region28: #{tpu_custom_call.1} parent=5 // pred_fallthru
        _
      %p466 = scmp.le.s32.totalorder 2, %s13
      // Predicated region
      $region53: #{tpu_custom_call.1} parent=5 // pred_check
        %p467 = pneg %p466
      $region54: #{tpu_custom_call.1} parent=5 // pred_check_branch
        %469 = sbr.rel (%p467) target = $region56
      $region55: #{tpu_custom_call.1} parent=5 // pred_region
        %s470 = ssub.s32 %s13, 2
        // Predicated region
        $region57: #{tpu_custom_call.1} parent=55 // pred_check
          %p471 = pneg %p89
        $region58: #{tpu_custom_call.1} parent=55 // pred_check_branch
          %473 = sbr.rel (%p471) target = $region60
        $region59: #{tpu_custom_call.1} parent=55 // pred_region
          %s474 = smul.u32 7, %s19
          %p475 = scmp.lt.s32.totalorder %s474, 48
          %s476 = scalar_select %p475, %s474, 48
          %s477 = smul.addr %s476, 8
          %s478 = scalar_lea.vmem %s2, %s477
        $region60: #{tpu_custom_call.1} parent=55 // pred_fallthru
          _
      $region56: #{tpu_custom_call.1} parent=5 // pred_fallthru
        _
    $region6: #{tpu_custom_call.1} parent=1 // loop_footer
      %s17 = sadd.s32 1, %s13
    $region7: #{tpu_custom_call.1} parent=1 // loop_footer_branch
      %12 = sbr.rel target = $region3
    $region8: #{tpu_custom_call.1} parent=1 // loop_exit
      _
    %479 = vsyncpa [#allocation3], 1
    %s480 = scalar_lea.sflag [#allocation3], 1
    %481 = vsyncpa %s480, 1
    %482 = vsyncpa [#allocation5], 1

</llo_original>
